<compile_context>
chip_gen: v7x
topology: tpu7x:2x2x1
jax: 0.10.0
libtpu: 0.0.40
codegen_flags: <defaults>
</compile_context>

<pallas_src>
import jax
import jax.numpy as jnp
from jax.experimental import pallas as pl
from jax.experimental.pallas import tpu as pltpu

ARCHITECTURE = [8, 64, 32, 16, 1]


def _round_up(n, m):
    return ((n + m - 1) // m) * m


def _vmem_capacity_bytes():
    """Physical VMEM per TensorCore; conservative fallback if query fails."""
    try:
        return int(pltpu.get_tpu_info().vmem_capacity_bytes)
    except Exception:
        return 64 << 20  # v7x has the smallest per-core VMEM


def mlp_kernel(x_ref,
               w1_ref, b1_ref,
               w2_ref, b2_ref,
               w3_ref, b3_ref,
               w4_ref, b4_ref,
               o_ref):
    """One batch tile: x_ref (TB, 8) -> o_ref (1, TB)."""
    act_dtype = x_ref.dtype                              # f32 or bf16 (streamed)
    x = x_ref[...]                                       # (TB, 8), batch on sublanes

    # Layer 1 contracts the feature axis of BOTH operands, landing the
    # activations in a batch-on-lanes (64, TB) layout with no explicit
    # transpose / relayout op.  Accumulate in f32, store activations in the
    # streaming dtype to keep VMEM scratch small at large TB.
    h = jnp.einsum("of,bf->ob", w1_ref[...], x,
                   preferred_element_type=jnp.float32)   # (64, TB) f32 acc
    h = jnp.maximum(h + b1_ref[...], 0.0).astype(act_dtype)
    h = jnp.maximum(
        jnp.dot(w2_ref[...], h, preferred_element_type=jnp.float32) + b2_ref[...],
        0.0).astype(act_dtype)                           # (32, TB)
    h = jnp.maximum(
        jnp.dot(w3_ref[...], h, preferred_element_type=jnp.float32) + b3_ref[...],
        0.0).astype(act_dtype)                           # (16, TB)
    o_ref[...] = (
        jnp.dot(w4_ref[...], h, preferred_element_type=jnp.float32) + b4_ref[...]
    ).astype(o_ref.dtype)                                # (1, TB), lane-dense


def binary_classifier_forward(x, params, *, block_batch=16384, use_bf16=False):
    """Forward pass of the BinaryClassifier MLP.

    x: [batch, 8] f32.
    params: list of (W [out,in], b [out,1]) pairs in PyTorch layout.
    use_bf16: stream x / weights and inter-layer activations as bf16
              (f32 accumulation) — ~1.6-1.8x HBM roofline improvement.
    """
    batch, in_feat = x.shape
    out_feat = params[-1][0].shape[0]

    stream_dtype = jnp.bfloat16 if use_bf16 else jnp.float32
    isz = jnp.dtype(stream_dtype).itemsize
    x = x.astype(stream_dtype)
    params = [(w.astype(stream_dtype), b.astype(jnp.float32)) for w, b in params]

    # --- Generation-aware batch tile ------------------------------------
    # Per-row VMEM working set: x tile is lane-padded 8->128 lanes and
    # double-buffered, intermediates are 64+32+16 values/row, output is a
    # double-buffered f32 (1, TB) row padded to 8 sublanes.
    row_bytes = 2 * 128 * isz + (64 + 32 + 16) * isz + 2 * 8 * 4
    vmem_cap = _vmem_capacity_bytes()
    tb_cap = max(128, ((int(vmem_cap * 0.45) // row_bytes) // 128) * 128)
    # >= 2 grid steps when possible so v7x can shard the batch across both
    # TensorCores (harmless extra step on v5e/v6e).
    tb = min(block_batch, _round_up(max(pl.cdiv(batch, 2), 1), 128), tb_cap)
    grid = (pl.cdiv(batch, tb),)

    flat_args = [x]
    in_specs = [pl.BlockSpec((tb, in_feat), lambda i: (i, 0))]
    for w, b in params:
        flat_args.extend([w, b])
        # Constant block indices -> weights/biases are DMA'd once and stay
        # resident in VMEM across all grid steps.
        in_specs.append(pl.BlockSpec(w.shape, lambda i: (0, 0)))
        in_specs.append(pl.BlockSpec(b.shape, lambda i: (0, 0)))

    weight_bytes = sum(w.size * isz + b.size * 4 for w, b in params)
    vmem_estimate = tb * row_bytes + 2 * weight_bytes + (2 << 20)
    vmem_limit = min(vmem_cap, max(32 << 20, int(vmem_estimate * 1.5)))

    flops = 2 * batch * sum(w.shape[0] * w.shape[1] for w, _ in params)
    bytes_accessed = (batch * in_feat * isz + batch * out_feat * 4 + weight_bytes)

    out2d = pl.pallas_call(
        mlp_kernel,
        out_shape=jax.ShapeDtypeStruct((out_feat, batch), jnp.float32),
        grid=grid,
        in_specs=in_specs,
        out_specs=pl.BlockSpec((out_feat, tb), lambda i: (0, i)),
        compiler_params=pltpu.CompilerParams(
            dimension_semantics=("parallel",),
            vmem_limit_bytes=vmem_limit),
        cost_estimate=pl.CostEstimate(flops=flops,
                                      transcendentals=0,
                                      bytes_accessed=bytes_accessed),
    )(*flat_args)

    # (1, batch) -> (batch, 1): cheap size-1-axis relayout; no padding to drop
    # beyond the tail columns of the partial last block, handled by [:batch].
    return jnp.transpose(out2d)[:batch]


def init_params(key, architecture):
    """Deterministic init mimicking PyTorch nn.Linear default (U(-k, k), k=1/sqrt(fan_in)).

    Weights stored in PyTorch's native [out_features, in_features] layout,
    biases as [out_features, 1].
    """
    params = []
    for i in range(len(architecture) - 1):
        fan_in, fan_out = architecture[i], architecture[i + 1]
        key, wk, bk = jax.random.split(key, 3)
        bound = 1.0 / jnp.sqrt(fan_in)
        w = jax.random.uniform(wk, (fan_out, fan_in), jnp.float32, -bound, bound)
        b = jax.random.uniform(bk, (fan_out, 1), jnp.float32, -bound, bound)
        params.append((w, b))
    return params


def reference_forward(x, params):
    h = x
    n = len(params)
    for i, (w, b) in enumerate(params):
        h = h @ w.T + b[:, 0]
        if i < n - 1:
            h = jnp.maximum(h, 0.0)
    return h


if __name__ == "__main__":
    key = jax.random.PRNGKey(0)
    key, xk = jax.random.split(key)

    # Small test shapes: batch deliberately not a multiple of the tile so the
    # partial last block + multi-step grid paths are exercised.
    batch = 300
    x = jax.random.normal(xk, (batch, ARCHITECTURE[0]), jnp.float32)
    params = init_params(key, ARCHITECTURE)
    ref = reference_forward(x, params)

    # f32 path (matches PyTorch numerics); block_batch kept small only to
    # force grid=(2,) at this tiny test batch — production default is 16384.
    out = jax.block_until_ready(
        binary_classifier_forward(x, params, block_batch=256))
    assert out.shape == (batch, 1), out.shape
    assert jnp.allclose(out, ref, atol=1e-5, rtol=1e-5), (
        "f32 mismatch vs reference, max abs err = %e"
        % float(jnp.max(jnp.abs(out - ref))))

    # bf16 streaming path (halved HBM read traffic); looser tolerance.
    out_bf16 = jax.block_until_ready(
        binary_classifier_forward(x, params, block_batch=256, use_bf16=True))
    assert out_bf16.shape == (batch, 1), out_bf16.shape
    assert jnp.allclose(out_bf16, ref, atol=5e-2, rtol=5e-2), (
        "bf16 mismatch vs reference, max abs err = %e"
        % float(jnp.max(jnp.abs(out_bf16 - ref))))

    print("KERNEL_OK")
</pallas_src>

<mosaic_0001>
module attributes {stable_mosaic.version = 11 : i64} {
  func.func @mlp_kernel(%arg0: i32, %arg1: memref<256x8xf32, #tpu.memory_space<vmem>>, %arg2: memref<64x8xf32, #tpu.memory_space<vmem>>, %arg3: memref<64x1xf32, #tpu.memory_space<vmem>>, %arg4: memref<32x64xf32, #tpu.memory_space<vmem>>, %arg5: memref<32x1xf32, #tpu.memory_space<vmem>>, %arg6: memref<16x32xf32, #tpu.memory_space<vmem>>, %arg7: memref<16x1xf32, #tpu.memory_space<vmem>>, %arg8: memref<1x16xf32, #tpu.memory_space<vmem>>, %arg9: memref<1x1xf32, #tpu.memory_space<vmem>>, %arg10: memref<1x256xf32, #tpu.memory_space<vmem>>) attributes {dimension_semantics = [#tpu.dimension_semantics<parallel>], iteration_bounds = array<i64: 2>, scalar_prefetch = 0 : i64, scratch_operands = 0 : i64, tpu.core_type = #tpu.core_type<tc>, window_params = [{transform_indices = @transform_0, window_bounds = array<i64: 256, 8>}, {pipeline_mode = #tpu.pipeline_mode<synchronous>, transform_indices = @transform_1, window_bounds = array<i64: 64, 8>}, {pipeline_mode = #tpu.pipeline_mode<synchronous>, transform_indices = @transform_2, window_bounds = array<i64: 64, 1>}, {pipeline_mode = #tpu.pipeline_mode<synchronous>, transform_indices = @transform_3, window_bounds = array<i64: 32, 64>}, {pipeline_mode = #tpu.pipeline_mode<synchronous>, transform_indices = @transform_4, window_bounds = array<i64: 32, 1>}, {pipeline_mode = #tpu.pipeline_mode<synchronous>, transform_indices = @transform_5, window_bounds = array<i64: 16, 32>}, {pipeline_mode = #tpu.pipeline_mode<synchronous>, transform_indices = @transform_6, window_bounds = array<i64: 16, 1>}, {pipeline_mode = #tpu.pipeline_mode<synchronous>, transform_indices = @transform_7, window_bounds = array<i64: 1, 16>}, {pipeline_mode = #tpu.pipeline_mode<synchronous>, transform_indices = @transform_8, window_bounds = array<i64: 1, 1>}, {transform_indices = @transform_9, window_bounds = array<i64: 1, 256>}]} {
    %c0 = arith.constant 0 : index
    %c0_0 = arith.constant 0 : index
    %0 = vector.load %arg1[%c0, %c0_0] : memref<256x8xf32, #tpu.memory_space<vmem>>, vector<256x8xf32>
    %c0_1 = arith.constant 0 : index
    %c0_2 = arith.constant 0 : index
    %1 = vector.load %arg2[%c0_1, %c0_2] : memref<64x8xf32, #tpu.memory_space<vmem>>, vector<64x8xf32>
    "tpu.trace_start"() <{level = 10 : i32, message = "of,bf->ob"}> : () -> ()
    %cst = arith.constant dense<0.000000e+00> : vector<64x256xf32>
    %2 = tpu.matmul %1, %0, %cst {dimension_numbers = #tpu.dot_dimension_numbers<[1], [1], [0], [0], [0, 0, 1, 0], [], []>} : vector<64x8xf32>, vector<256x8xf32>, vector<64x256xf32> -> vector<64x256xf32>
    "tpu.trace_stop"() : () -> ()
    %c0_3 = arith.constant 0 : index
    %c0_4 = arith.constant 0 : index
    %3 = vector.load %arg3[%c0_3, %c0_4] : memref<64x1xf32, #tpu.memory_space<vmem>>, vector<64x1xf32>
    %4 = vector.broadcast %3 : vector<64x1xf32> to vector<64x256xf32>
    %5 = arith.addf %2, %4 : vector<64x256xf32>
    %cst_5 = arith.constant 0.000000e+00 : f32
    %6 = vector.broadcast %cst_5 : f32 to vector<64x256xf32>
    %7 = arith.maximumf %5, %6 : vector<64x256xf32>
    %c0_6 = arith.constant 0 : index
    %c0_7 = arith.constant 0 : index
    %8 = vector.load %arg4[%c0_6, %c0_7] : memref<32x64xf32, #tpu.memory_space<vmem>>, vector<32x64xf32>
    %cst_8 = arith.constant dense<0.000000e+00> : vector<32x256xf32>
    %9 = tpu.matmul %8, %7, %cst_8 {dimension_numbers = #tpu.dot_dimension_numbers<[1], [0], [0], [1], [0, 0, 1, 1], [], []>} : vector<32x64xf32>, vector<64x256xf32>, vector<32x256xf32> -> vector<32x256xf32>
    %c0_9 = arith.constant 0 : index
    %c0_10 = arith.constant 0 : index
    %10 = vector.load %arg5[%c0_9, %c0_10] : memref<32x1xf32, #tpu.memory_space<vmem>>, vector<32x1xf32>
    %11 = vector.broadcast %10 : vector<32x1xf32> to vector<32x256xf32>
    %12 = arith.addf %9, %11 : vector<32x256xf32>
    %cst_11 = arith.constant 0.000000e+00 : f32
    %13 = vector.broadcast %cst_11 : f32 to vector<32x256xf32>
    %14 = arith.maximumf %12, %13 : vector<32x256xf32>
    %c0_12 = arith.constant 0 : index
    %c0_13 = arith.constant 0 : index
    %15 = vector.load %arg6[%c0_12, %c0_13] : memref<16x32xf32, #tpu.memory_space<vmem>>, vector<16x32xf32>
    %cst_14 = arith.constant dense<0.000000e+00> : vector<16x256xf32>
    %16 = tpu.matmul %15, %14, %cst_14 {dimension_numbers = #tpu.dot_dimension_numbers<[1], [0], [0], [1], [0, 0, 1, 1], [], []>} : vector<16x32xf32>, vector<32x256xf32>, vector<16x256xf32> -> vector<16x256xf32>
    %c0_15 = arith.constant 0 : index
    %c0_16 = arith.constant 0 : index
    %17 = vector.load %arg7[%c0_15, %c0_16] : memref<16x1xf32, #tpu.memory_space<vmem>>, vector<16x1xf32>
    %18 = vector.broadcast %17 : vector<16x1xf32> to vector<16x256xf32>
    %19 = arith.addf %16, %18 : vector<16x256xf32>
    %cst_17 = arith.constant 0.000000e+00 : f32
    %20 = vector.broadcast %cst_17 : f32 to vector<16x256xf32>
    %21 = arith.maximumf %19, %20 : vector<16x256xf32>
    %c0_18 = arith.constant 0 : index
    %c0_19 = arith.constant 0 : index
    %22 = vector.load %arg8[%c0_18, %c0_19] : memref<1x16xf32, #tpu.memory_space<vmem>>, vector<1x16xf32>
    %cst_20 = arith.constant dense<0.000000e+00> : vector<1x256xf32>
    %23 = tpu.matmul %22, %21, %cst_20 {dimension_numbers = #tpu.dot_dimension_numbers<[1], [0], [0], [1], [0, 0, 1, 1], [], []>} : vector<1x16xf32>, vector<16x256xf32>, vector<1x256xf32> -> vector<1x256xf32>
    %c0_21 = arith.constant 0 : index
    %c0_22 = arith.constant 0 : index
    %24 = vector.load %arg9[%c0_21, %c0_22] : memref<1x1xf32, #tpu.memory_space<vmem>>, vector<1x1xf32>
    %25 = vector.broadcast %24 : vector<1x1xf32> to vector<1x256xf32>
    %26 = arith.addf %23, %25 : vector<1x256xf32>
    %c0_23 = arith.constant 0 : index
    %c0_24 = arith.constant 0 : index
    %27 = vector.load %arg10[%c0_23, %c0_24] : memref<1x256xf32, #tpu.memory_space<vmem>>, vector<1x256xf32>
    tpu.vector_store %arg10[%c0_23, %c0_24], %26 {strides = array<i32>} : memref<1x256xf32, #tpu.memory_space<vmem>>, vector<1x256xf32>,
    return
  }
  func.func @transform_0(%arg0: i32) -> (i32, i32) {
    %c0_i32 = arith.constant 0 : i32
    %c0_i32_0 = arith.constant 0 : i32
    return %arg0, %c0_i32 : i32, i32
  }
  func.func @transform_1(%arg0: i32) -> (i32, i32) {
    %c0_i32 = arith.constant 0 : i32
    %c0_i32_0 = arith.constant 0 : i32
    %c0_i32_1 = arith.constant 0 : i32
    return %c0_i32, %c0_i32_0 : i32, i32
  }
  func.func @transform_2(%arg0: i32) -> (i32, i32) {
    %c0_i32 = arith.constant 0 : i32
    %c0_i32_0 = arith.constant 0 : i32
    %c0_i32_1 = arith.constant 0 : i32
    return %c0_i32, %c0_i32_0 : i32, i32
  }
  func.func @transform_3(%arg0: i32) -> (i32, i32) {
    %c0_i32 = arith.constant 0 : i32
    %c0_i32_0 = arith.constant 0 : i32
    %c0_i32_1 = arith.constant 0 : i32
    return %c0_i32, %c0_i32_0 : i32, i32
  }
  func.func @transform_4(%arg0: i32) -> (i32, i32) {
    %c0_i32 = arith.constant 0 : i32
    %c0_i32_0 = arith.constant 0 : i32
    %c0_i32_1 = arith.constant 0 : i32
    return %c0_i32, %c0_i32_0 : i32, i32
  }
  func.func @transform_5(%arg0: i32) -> (i32, i32) {
    %c0_i32 = arith.constant 0 : i32
    %c0_i32_0 = arith.constant 0 : i32
    %c0_i32_1 = arith.constant 0 : i32
    return %c0_i32, %c0_i32_0 : i32, i32
  }
  func.func @transform_6(%arg0: i32) -> (i32, i32) {
    %c0_i32 = arith.constant 0 : i32
    %c0_i32_0 = arith.constant 0 : i32
    %c0_i32_1 = arith.constant 0 : i32
    return %c0_i32, %c0_i32_0 : i32, i32
  }
  func.func @transform_7(%arg0: i32) -> (i32, i32) {
    %c0_i32 = arith.constant 0 : i32
    %c0_i32_0 = arith.constant 0 : i32
    %c0_i32_1 = arith.constant 0 : i32
    return %c0_i32, %c0_i32_0 : i32, i32
  }
  func.func @transform_8(%arg0: i32) -> (i32, i32) {
    %c0_i32 = arith.constant 0 : i32
    %c0_i32_0 = arith.constant 0 : i32
    %c0_i32_1 = arith.constant 0 : i32
    return %c0_i32, %c0_i32_0 : i32, i32
  }
  func.func @transform_9(%arg0: i32) -> (i32, i32) {
    %c0_i32 = arith.constant 0 : i32
    %c0_i32_0 = arith.constant 0 : i32
    return %c0_i32, %arg0 : i32, i32
  }
}

</mosaic_0001>

<llo_original>
// kernel: tpu_custom_call.1
$region0: #{tpu_custom_call.1}
  #allocation0 [shape = 'u32[]', space=smem, size = 0x4, offset = 0x4, fixed_abs, tag = 'smem constant byte address 0x4 - core index']
  #allocation1 [shape = 'u32[144,128]{1,0:T(1,128)}', space=vmem, size = 0x12000, scoped, tag = 'internal scratch']
  #allocation2 [shape = 'f32[1,1]{1,0:T(1,128)S(1)}', space=vmem, size = 0x200, scoped, tag = 'scoped memory for tpu_custom_call.1']
  %s0 = inlined_call_operand.vmem [shape: f32[300,8], index: 0, kind: input, shape index: {}]
  %s1 = inlined_call_operand.vmem [shape: f32[64,8], index: 1, kind: input, shape index: {}]
  %s2 = inlined_call_operand.vmem [shape: f32[64,1], index: 2, kind: input, shape index: {}]
  %s3 = inlined_call_operand.vmem [shape: f32[32,64], index: 3, kind: input, shape index: {}]
  %s4 = inlined_call_operand.vmem [shape: f32[32,1], index: 4, kind: input, shape index: {}]
  %s5 = inlined_call_operand.vmem [shape: f32[16,32], index: 5, kind: input, shape index: {}]
  %s6 = inlined_call_operand.vmem [shape: f32[16,1], index: 6, kind: input, shape index: {}]
  %s7 = inlined_call_operand.vmem [shape: f32[1,16], index: 7, kind: input, shape index: {}]
  %s8 = inlined_call_operand.<no memory space> [shape: f32[1,1], index: 8, kind: input, shape index: {}]
  %s9 = inlined_call_operand.hbm [shape: f32[1,300], index: 9, kind: output, shape index: {}]
  %s10 = sld [smem:[#allocation0]]
  $region69: #{tpu_custom_call.1} parent=0
    _
  %s12 = ssub.s32 1, %s10
  %s13 = scalar_select 0, %s12, %s10
  %v14 = vstv %s8
  %15 = vst [vmem:[#allocation2] sm:$0x1] %v14
  $region1: #{tpu_custom_call.1} parent=0
    #allocation3 [shape = 'u8[2048]{0}', space=vmem, size = 0x800, scoped, tag = 'output window, operand 0']
    #allocation4 [shape = 's32[2]{0}', space=sflag, size = 0x8, scoped, tag = 'scoped memory for tpu_custom_call.1']
    %16 = vsyncpa [#allocation4], 0
    %s17 = scalar_lea.sflag [#allocation4], 1
    %18 = vsyncpa %s17, 0
    loop: start=0, step=1, limit=4
    $region2: #{tpu_custom_call.1} parent=1 // loop_pre_header
      _
    $region3: #{tpu_custom_call.1} parent=1 // loop_header
      %s20 = sphi 0, %s24
      %p21 = scmp.ge.s32.totalorder %s20, 4
      %s30 = sphi 0, %s32
      %s33 = sphi 0, %s30
      %s34 = sphi 0, %s33
      %s50 = sphi 0, %s34
      %s54 = sphi 0, %s54
      %s56 = sphi 0, %s54
      %s57 = sphi 0, %s56
      %s71 = sphi 0, %s57
      %s75 = sphi 0, %s75
      %s77 = sphi 0, %s75
      %s78 = sphi 0, %s77
      %s92 = sphi 0, %s78
      %s96 = sphi 0, %s96
      %s98 = sphi 0, %s96
      %s99 = sphi 0, %s98
      %s113 = sphi 0, %s99
      %s117 = sphi 0, %s117
      %s119 = sphi 0, %s117
      %s120 = sphi 0, %s119
      %s134 = sphi 0, %s120
      %s138 = sphi 0, %s138
      %s140 = sphi 0, %s138
      %s141 = sphi 0, %s140
      %s155 = sphi 0, %s141
      %s159 = sphi 0, %s159
      %s161 = sphi 0, %s159
      %s162 = sphi 0, %s161
      %s176 = sphi 0, %s162
      %s180 = sphi 0, %s180
      %s182 = sphi 0, %s180
      %s183 = sphi 0, %s182
      %s197 = sphi 0, %s183
      %s201 = sphi 0, %s201
      %s203 = sphi 0, %s201
      %s204 = sphi 0, %s203
      %s218 = sphi 0, %s204
      %s224 = sphi 0, %s226
      %s227 = sphi 0, %s224
      %s228 = sphi 0, %s227
      %s244 = sphi 0, %s228
    $region4: #{tpu_custom_call.1} parent=1 // loop_header_branch
      %23 = sbr.rel (%p21) target = $region8
    $region5: #{tpu_custom_call.1} parent=1 // loop_body
      %s25 = ssub.s32 %s20, 1
      %s26 = ssub.s32 %s20, 2
      %s27 = sadd.s32 %s20, 1
      %s28 = ssub.s32 %s20, %s27
      %p29 = scmp.eq.s32.totalorder %s28, 0
      %s31 = sadd.s32 %s30, 1
      %s32 = scalar_select %p29, %s30, %s31
      %p35 = pneg %p29
      %p36 = scmp.eq.s32.totalorder %s20, 1
      %p37 = por %p35, %p36
      %p38 = scmp.ne.s32.totalorder %s30, %s33
      %p39 = scmp.eq.s32.totalorder %s20, 0
      %p40 = por %p38, %p39
      %p41 = scmp.ne.s32.totalorder %s30, %s33
      %p42 = scmp.eq.s32.totalorder %s25, 1
      %p43 = por %p41, %p42
      %p44 = scmp.ne.s32.totalorder %s33, %s34
      %p45 = scmp.eq.s32.totalorder %s25, 0
      %p46 = por %p44, %p45
      %p47 = scmp.ne.s32.totalorder %s33, %s34
      %p48 = scmp.eq.s32.totalorder %s26, 1
      %p49 = por %p47, %p48
      %p51 = scmp.ne.s32.totalorder %s34, %s50
      %p52 = scmp.eq.s32.totalorder %s26, 0
      %p53 = por %p51, %p52
      %s55 = sadd.s32 %s54, 1
      %p58 = scmp.eq.s32.totalorder %s20, 1
      %p59 = scmp.ne.s32.totalorder %s54, %s56
      %p60 = scmp.eq.s32.totalorder %s20, 0
      %p61 = por %p59, %p60
      %p62 = scmp.ne.s32.totalorder %s54, %s56
      %p63 = scmp.eq.s32.totalorder %s25, 1
      %p64 = por %p62, %p63
      %p65 = scmp.ne.s32.totalorder %s56, %s57
      %p66 = scmp.eq.s32.totalorder %s25, 0
      %p67 = por %p65, %p66
      %p68 = scmp.ne.s32.totalorder %s56, %s57
      %p69 = scmp.eq.s32.totalorder %s26, 1
      %p70 = por %p68, %p69
      %p72 = scmp.ne.s32.totalorder %s57, %s71
      %p73 = scmp.eq.s32.totalorder %s26, 0
      %p74 = por %p72, %p73
      %s76 = sadd.s32 %s75, 1
      %p79 = scmp.eq.s32.totalorder %s20, 1
      %p80 = scmp.ne.s32.totalorder %s75, %s77
      %p81 = scmp.eq.s32.totalorder %s20, 0
      %p82 = por %p80, %p81
      %p83 = scmp.ne.s32.totalorder %s75, %s77
      %p84 = scmp.eq.s32.totalorder %s25, 1
      %p85 = por %p83, %p84
      %p86 = scmp.ne.s32.totalorder %s77, %s78
      %p87 = scmp.eq.s32.totalorder %s25, 0
      %p88 = por %p86, %p87
      %p89 = scmp.ne.s32.totalorder %s77, %s78
      %p90 = scmp.eq.s32.totalorder %s26, 1
      %p91 = por %p89, %p90
      %p93 = scmp.ne.s32.totalorder %s78, %s92
      %p94 = scmp.eq.s32.totalorder %s26, 0
      %p95 = por %p93, %p94
      %s97 = sadd.s32 %s96, 1
      %p100 = scmp.eq.s32.totalorder %s20, 1
      %p101 = scmp.ne.s32.totalorder %s96, %s98
      %p102 = scmp.eq.s32.totalorder %s20, 0
      %p103 = por %p101, %p102
      %p104 = scmp.ne.s32.totalorder %s96, %s98
      %p105 = scmp.eq.s32.totalorder %s25, 1
      %p106 = por %p104, %p105
      %p107 = scmp.ne.s32.totalorder %s98, %s99
      %p108 = scmp.eq.s32.totalorder %s25, 0
      %p109 = por %p107, %p108
      %p110 = scmp.ne.s32.totalorder %s98, %s99
      %p111 = scmp.eq.s32.totalorder %s26, 1
      %p112 = por %p110, %p111
      %p114 = scmp.ne.s32.totalorder %s99, %s113
      %p115 = scmp.eq.s32.totalorder %s26, 0
      %p116 = por %p114, %p115
      %s118 = sadd.s32 %s117, 1
      %p121 = scmp.eq.s32.totalorder %s20, 1
      %p122 = scmp.ne.s32.totalorder %s117, %s119
      %p123 = scmp.eq.s32.totalorder %s20, 0
      %p124 = por %p122, %p123
      %p125 = scmp.ne.s32.totalorder %s117, %s119
      %p126 = scmp.eq.s32.totalorder %s25, 1
      %p127 = por %p125, %p126
      %p128 = scmp.ne.s32.totalorder %s119, %s120
      %p129 = scmp.eq.s32.totalorder %s25, 0
      %p130 = por %p128, %p129
      %p131 = scmp.ne.s32.totalorder %s119, %s120
      %p132 = scmp.eq.s32.totalorder %s26, 1
      %p133 = por %p131, %p132
      %p135 = scmp.ne.s32.totalorder %s120, %s134
      %p136 = scmp.eq.s32.totalorder %s26, 0
      %p137 = por %p135, %p136
      %s139 = sadd.s32 %s138, 1
      %p142 = scmp.eq.s32.totalorder %s20, 1
      %p143 = scmp.ne.s32.totalorder %s138, %s140
      %p144 = scmp.eq.s32.totalorder %s20, 0
      %p145 = por %p143, %p144
      %p146 = scmp.ne.s32.totalorder %s138, %s140
      %p147 = scmp.eq.s32.totalorder %s25, 1
      %p148 = por %p146, %p147
      %p149 = scmp.ne.s32.totalorder %s140, %s141
      %p150 = scmp.eq.s32.totalorder %s25, 0
      %p151 = por %p149, %p150
      %p152 = scmp.ne.s32.totalorder %s140, %s141
      %p153 = scmp.eq.s32.totalorder %s26, 1
      %p154 = por %p152, %p153
      %p156 = scmp.ne.s32.totalorder %s141, %s155
      %p157 = scmp.eq.s32.totalorder %s26, 0
      %p158 = por %p156, %p157
      %s160 = sadd.s32 %s159, 1
      %p163 = scmp.eq.s32.totalorder %s20, 1
      %p164 = scmp.ne.s32.totalorder %s159, %s161
      %p165 = scmp.eq.s32.totalorder %s20, 0
      %p166 = por %p164, %p165
      %p167 = scmp.ne.s32.totalorder %s159, %s161
      %p168 = scmp.eq.s32.totalorder %s25, 1
      %p169 = por %p167, %p168
      %p170 = scmp.ne.s32.totalorder %s161, %s162
      %p171 = scmp.eq.s32.totalorder %s25, 0
      %p172 = por %p170, %p171
      %p173 = scmp.ne.s32.totalorder %s161, %s162
      %p174 = scmp.eq.s32.totalorder %s26, 1
      %p175 = por %p173, %p174
      %p177 = scmp.ne.s32.totalorder %s162, %s176
      %p178 = scmp.eq.s32.totalorder %s26, 0
      %p179 = por %p177, %p178
      %s181 = sadd.s32 %s180, 1
      %p184 = scmp.eq.s32.totalorder %s20, 1
      %p185 = scmp.ne.s32.totalorder %s180, %s182
      %p186 = scmp.eq.s32.totalorder %s20, 0
      %p187 = por %p185, %p186
      %p188 = scmp.ne.s32.totalorder %s180, %s182
      %p189 = scmp.eq.s32.totalorder %s25, 1
      %p190 = por %p188, %p189
      %p191 = scmp.ne.s32.totalorder %s182, %s183
      %p192 = scmp.eq.s32.totalorder %s25, 0
      %p193 = por %p191, %p192
      %p194 = scmp.ne.s32.totalorder %s182, %s183
      %p195 = scmp.eq.s32.totalorder %s26, 1
      %p196 = por %p194, %p195
      %p198 = scmp.ne.s32.totalorder %s183, %s197
      %p199 = scmp.eq.s32.totalorder %s26, 0
      %p200 = por %p198, %p199
      %s202 = sadd.s32 %s201, 1
      %p205 = scmp.eq.s32.totalorder %s20, 1
      %p206 = scmp.ne.s32.totalorder %s201, %s203
      %p207 = scmp.eq.s32.totalorder %s20, 0
      %p208 = por %p206, %p207
      %p209 = scmp.ne.s32.totalorder %s201, %s203
      %p210 = scmp.eq.s32.totalorder %s25, 1
      %p211 = por %p209, %p210
      %p212 = scmp.ne.s32.totalorder %s203, %s204
      %p213 = scmp.eq.s32.totalorder %s25, 0
      %p214 = por %p212, %p213
      %p215 = scmp.ne.s32.totalorder %s203, %s204
      %p216 = scmp.eq.s32.totalorder %s26, 1
      %p217 = por %p215, %p216
      %p219 = scmp.ne.s32.totalorder %s204, %s218
      %p220 = scmp.eq.s32.totalorder %s26, 0
      %p221 = por %p219, %p220
      %s222 = ssub.s32 %s20, %s27
      %p223 = scmp.eq.s32.totalorder %s222, 0
      %s225 = sadd.s32 %s224, 1
      %s226 = scalar_select %p223, %s224, %s225
      %p229 = pneg %p223
      %p230 = scmp.eq.s32.totalorder %s20, 1
      %p231 = por %p229, %p230
      %p232 = scmp.ne.s32.totalorder %s224, %s227
      %p233 = scmp.eq.s32.totalorder %s20, 0
      %p234 = por %p232, %p233
      %p235 = scmp.ne.s32.totalorder %s224, %s227
      %p236 = scmp.eq.s32.totalorder %s25, 1
      %p237 = por %p235, %p236
      %p238 = scmp.ne.s32.totalorder %s227, %s228
      %p239 = scmp.eq.s32.totalorder %s25, 0
      %p240 = por %p238, %p239
      %p241 = scmp.ne.s32.totalorder %s227, %s228
      %p242 = scmp.eq.s32.totalorder %s26, 1
      %p243 = por %p241, %p242
      %p245 = scmp.ne.s32.totalorder %s228, %s244
      %p246 = scmp.eq.s32.totalorder %s26, 0
      %p247 = por %p245, %p246
      %p248 = scmp.le.s32.totalorder 1, %s20
      %p249 = scmp.lt.s32.totalorder %s20, 3
      %p250 = pnand %p248, %p249
      %p251 = pneg %p250
      // Predicated region
      $region9: #{tpu_custom_call.1} parent=5 // pred_check
        _
      $region10: #{tpu_custom_call.1} parent=5 // pred_check_branch
        %253 = sbr.rel (%p250) target = $region12
      $region11: #{tpu_custom_call.1} parent=5 // pred_region
        %s254 = ssub.s32 %s20, 1
        // Predicated region
        $region13: #{tpu_custom_call.1} parent=11 // pred_check
          %p255 = pneg %p67
        $region14: #{tpu_custom_call.1} parent=11 // pred_check_branch
          %257 = sbr.rel (%p255) target = $region16
        $region15: #{tpu_custom_call.1} parent=11 // pred_region
          _
        $region16: #{tpu_custom_call.1} parent=11 // pred_fallthru
          _
        // Predicated region
        $region17: #{tpu_custom_call.1} parent=11 // pred_check
          %p258 = pneg %p88
        $region18: #{tpu_custom_call.1} parent=11 // pred_check_branch
          %260 = sbr.rel (%p258) target = $region20
        $region19: #{tpu_custom_call.1} parent=11 // pred_region
          _
        $region20: #{tpu_custom_call.1} parent=11 // pred_fallthru
          _
        // Predicated region
        $region21: #{tpu_custom_call.1} parent=11 // pred_check
          %p261 = pneg %p109
        $region22: #{tpu_custom_call.1} parent=11 // pred_check_branch
          %263 = sbr.rel (%p261) target = $region24
        $region23: #{tpu_custom_call.1} parent=11 // pred_region
          _
        $region24: #{tpu_custom_call.1} parent=11 // pred_fallthru
          _
        // Predicated region
        $region25: #{tpu_custom_call.1} parent=11 // pred_check
          %p264 = pneg %p130
        $region26: #{tpu_custom_call.1} parent=11 // pred_check_branch
          %266 = sbr.rel (%p264) target = $region28
        $region27: #{tpu_custom_call.1} parent=11 // pred_region
          _
        $region28: #{tpu_custom_call.1} parent=11 // pred_fallthru
          _
        // Predicated region
        $region29: #{tpu_custom_call.1} parent=11 // pred_check
          %p267 = pneg %p151
        $region30: #{tpu_custom_call.1} parent=11 // pred_check_branch
          %269 = sbr.rel (%p267) target = $region32
        $region31: #{tpu_custom_call.1} parent=11 // pred_region
          _
        $region32: #{tpu_custom_call.1} parent=11 // pred_fallthru
          _
        // Predicated region
        $region33: #{tpu_custom_call.1} parent=11 // pred_check
          %p270 = pneg %p172
        $region34: #{tpu_custom_call.1} parent=11 // pred_check_branch
          %272 = sbr.rel (%p270) target = $region36
        $region35: #{tpu_custom_call.1} parent=11 // pred_region
          _
        $region36: #{tpu_custom_call.1} parent=11 // pred_fallthru
          _
        // Predicated region
        $region37: #{tpu_custom_call.1} parent=11 // pred_check
          %p273 = pneg %p193
        $region38: #{tpu_custom_call.1} parent=11 // pred_check_branch
          %275 = sbr.rel (%p273) target = $region40
        $region39: #{tpu_custom_call.1} parent=11 // pred_region
          _
        $region40: #{tpu_custom_call.1} parent=11 // pred_fallthru
          _
        // Predicated region
        $region41: #{tpu_custom_call.1} parent=11 // pred_check
          %p276 = pneg %p214
        $region42: #{tpu_custom_call.1} parent=11 // pred_check_branch
          %278 = sbr.rel (%p276) target = $region44
        $region43: #{tpu_custom_call.1} parent=11 // pred_region
          _
        $region44: #{tpu_custom_call.1} parent=11 // pred_fallthru
          _
      $region12: #{tpu_custom_call.1} parent=5 // pred_fallthru
        _
      %p279 = scmp.lt.s32.totalorder %s20, 2
      // Predicated region
      $region45: #{tpu_custom_call.1} parent=5 // pred_check
        %p280 = pneg %p279
      $region46: #{tpu_custom_call.1} parent=5 // pred_check_branch
        %282 = sbr.rel (%p280) target = $region48
      $region47: #{tpu_custom_call.1} parent=5 // pred_region
        // Predicated region
        $region49: #{tpu_custom_call.1} parent=47 // pred_check
          %p283 = pneg %p40
        $region50: #{tpu_custom_call.1} parent=47 // pred_check_branch
          %285 = sbr.rel (%p283) target = $region52
        $region51: #{tpu_custom_call.1} parent=47 // pred_region
          %s286 = smul.u32 32, %s20
          %s287 = ssub.s32 38, %s286
          %p288 = scmp.lt.s32.totalorder %s287, 32
          %s289 = scalar_select %p288, %s287, 32
          %s290 = smul.u32 128, %s289
          %p291 = scmp.lt.s32.totalorder %s286, 37
          %s292 = scalar_select %p291, %s286, 37
          %s293 = smul.addr %s292, 8
          %s294 = scalar_lea.vmem %s0, %s293
          %s295 = smul.u32 32, %s20
          %s296 = ssub.s32 38, %s295
          %p297 = scmp.lt.s32.totalorder %s296, 32
          %s298 = scalar_select %p297, %s296, 32
          %s299 = smul.u32 128, %s298
        $region52: #{tpu_custom_call.1} parent=47 // pred_fallthru
          _
      $region48: #{tpu_custom_call.1} parent=5 // pred_fallthru
        _
      %p300 = scmp.le.s32.totalorder 1, %s20
      %p301 = scmp.lt.s32.totalorder %s20, 3
      %p302 = pnand %p300, %p301
      %p303 = pneg %p302
      // Predicated region
      $region53: #{tpu_custom_call.1} parent=5 // pred_check
        _
      $region54: #{tpu_custom_call.1} parent=5 // pred_check_branch
        %305 = sbr.rel (%p302) target = $region56
      $region55: #{tpu_custom_call.1} parent=5 // pred_region
        %s306 = ssub.s32 %s20, 1
        %s307 = smul.u32 32, %s25
        %s308 = ssub.s32 38, %s307
        %p309 = scmp.lt.s32.totalorder %s308, 32
        %s310 = scalar_select %p309, %s308, 32
        %s311 = smul.u32 128, %s310
        %p312 = scmp.lt.s32.totalorder %s307, 37
        %s313 = scalar_select %p312, %s307, 37
        %s314 = smul.addr %s313, 8
        %s315 = scalar_lea.vmem %s0, %s314
        %p316 = pneg %p46
        %p317 = pneg %p43
        %p318 = pneg %p67
        %p319 = pneg %p64
        %p320 = pneg %p88
        %p321 = pneg %p85
        %p322 = pneg %p109
        %p323 = pneg %p106
        %p324 = pneg %p130
        %p325 = pneg %p127
        %p326 = pneg %p151
        %p327 = pneg %p148
        %p328 = pneg %p172
        %p329 = pneg %p169
        %p330 = pneg %p193
        %p331 = pneg %p190
        %p332 = pneg %p214
        %p333 = pneg %p211
        %p334 = pneg %p240
        %p335 = pneg %p237
        %s336 = sand.u32 %s227, 1
        %s337 = scalar_lea.sflag [#allocation4], %s336
        %s338 = sand.u32 %s227, 1
        %s339 = smul.addr %s338, 2
        %s340 = scalar_lea.vmem [#allocation3], %s339
        %s341 = smul.u32 32, %s25
        %s342 = ssub.s32 38, %s341
        %p343 = scmp.lt.s32.totalorder %s342, 32
        %s344 = scalar_select %p343, %s342, 32
        %s345 = smul.u32 128, %s344
        %p346 = scmp.lt.s32.totalorder %s341, 37
        %s347 = scalar_select %p346, %s341, 37
        %s348 = smul.addr %s347, 8
        %s349 = scalar_lea.vmem %s0, %s348
        %s350 = smul.u32 32, %s25
        %s351 = ssub.s32 38, %s350
        %p352 = scmp.lt.s32.totalorder %s351, 32
        %s353 = scalar_select %p352, %s351, 32
        %s354 = smul.u32 128, %s353
        %s355 = smul.u32 2, %s25
        %s356 = ssub.s32 3, %s355
        %p357 = scmp.lt.s32.totalorder %s356, 2
        %s358 = scalar_select %p357, %s356, 2
        %s359 = smul.u32 16, %s358
        %v360 = vld [vmem:[%s349] sm:$0xff]
        %v361 = vld [vmem:[%s349 + $0x8] sm:$0xff]
        %v362 = vld [vmem:[%s349 + $0x10] sm:$0xff]
        %v363 = vld [vmem:[%s349 + $0x18] sm:$0xff]
        %v364 = vld [vmem:[%s349 + $0x20] sm:$0xff]
        %v365 = vld [vmem:[%s349 + $0x28] sm:$0xff]
        %v366 = vld [vmem:[%s349 + $0x30] sm:$0xff]
        %v367 = vld [vmem:[%s349 + $0x38] sm:$0xff]
        %v368 = vld [vmem:[%s349 + $0x40] sm:$0xff]
        %v369 = vld [vmem:[%s349 + $0x48] sm:$0xff]
        %v370 = vld [vmem:[%s349 + $0x50] sm:$0xff]
        %v371 = vld [vmem:[%s349 + $0x58] sm:$0xff]
        %v372 = vld [vmem:[%s349 + $0x60] sm:$0xff]
        %v373 = vld [vmem:[%s349 + $0x68] sm:$0xff]
        %v374 = vld [vmem:[%s349 + $0x70] sm:$0xff]
        %v375 = vld [vmem:[%s349 + $0x78] sm:$0xff]
        %v376 = vld [vmem:[%s349 + $0x80] sm:$0xff]
        %v377 = vld [vmem:[%s349 + $0x88] sm:$0xff]
        %v378 = vld [vmem:[%s349 + $0x90] sm:$0xff]
        %v379 = vld [vmem:[%s349 + $0x98] sm:$0xff]
        %v380 = vld [vmem:[%s349 + $0xa0] sm:$0xff]
        %v381 = vld [vmem:[%s349 + $0xa8] sm:$0xff]
        %v382 = vld [vmem:[%s349 + $0xb0] sm:$0xff]
        %v383 = vld [vmem:[%s349 + $0xb8] sm:$0xff]
        %v384 = vld [vmem:[%s349 + $0xc0] sm:$0xff]
        %v385 = vld [vmem:[%s349 + $0xc8] sm:$0xff]
        %v386 = vld [vmem:[%s349 + $0xd0] sm:$0xff]
        %v387 = vld [vmem:[%s349 + $0xd8] sm:$0xff]
        %v388 = vld [vmem:[%s349 + $0xe0] sm:$0xff]
        %v389 = vld [vmem:[%s349 + $0xe8] sm:$0xff]
        %v390 = vld [vmem:[%s349 + $0xf0] sm:$0xff]
        %v391 = vld [vmem:[%s349 + $0xf8] sm:$0xff]
        %v392 = vld [vmem:[%s1] sm:$0xff]
        %v393 = vld [vmem:[%s1 + $0x8] sm:$0xff]
        %v394 = vld [vmem:[%s1 + $0x10] sm:$0xff]
        %v395 = vld [vmem:[%s1 + $0x18] sm:$0xff]
        %v396 = vld [vmem:[%s1 + $0x20] sm:$0xff]
        %v397 = vld [vmem:[%s1 + $0x28] sm:$0xff]
        %v398 = vld [vmem:[%s1 + $0x30] sm:$0xff]
        %v399 = vld [vmem:[%s1 + $0x38] sm:$0xff]
        %v400 = vld [vmem:[%s2] sm:$0xff]
        %v401 = vld [vmem:[%s2 + $0x8] sm:$0xff]
        %v402 = vld [vmem:[%s2 + $0x10] sm:$0xff]
        %v403 = vld [vmem:[%s2 + $0x18] sm:$0xff]
        %v404 = vld [vmem:[%s2 + $0x20] sm:$0xff]
        %v405 = vld [vmem:[%s2 + $0x28] sm:$0xff]
        %v406 = vld [vmem:[%s2 + $0x30] sm:$0xff]
        %v407 = vld [vmem:[%s2 + $0x38] sm:$0xff]
        %409 = vset.pattern.permute.xlu0 0
        %410 = vperm.xlu0 %409, %v400
        %v411 = vpop.permute.xlu0 %410
        %414 = vset.pattern.permute.xlu0 0
        %415 = vperm.xlu0 %414, %v401
        %v416 = vpop.permute.xlu0 %415
        %419 = vset.pattern.permute.xlu0 0
        %420 = vperm.xlu0 %419, %v402
        %v421 = vpop.permute.xlu0 %420
        %424 = vset.pattern.permute.xlu0 0
        %425 = vperm.xlu0 %424, %v403
        %v426 = vpop.permute.xlu0 %425
        %429 = vset.pattern.permute.xlu0 0
        %430 = vperm.xlu0 %429, %v404
        %v431 = vpop.permute.xlu0 %430
        %434 = vset.pattern.permute.xlu0 0
        %435 = vperm.xlu0 %434, %v405
        %v436 = vpop.permute.xlu0 %435
        %439 = vset.pattern.permute.xlu0 0
        %440 = vperm.xlu0 %439, %v406
        %v441 = vpop.permute.xlu0 %440
        %444 = vset.pattern.permute.xlu0 0
        %445 = vperm.xlu0 %444, %v407
        %v446 = vpop.permute.xlu0 %445
        %vm448 = vcmask 64512
        %v450 = vsel %vm448, %v392, 0
        %v453 = vsel %vm448, %v393, 0
        %v456 = vsel %vm448, %v394, 0
        %v459 = vsel %vm448, %v395, 0
        %v462 = vsel %vm448, %v396, 0
        %v465 = vsel %vm448, %v397, 0
        %v468 = vsel %vm448, %v398, 0
        %v471 = vsel %vm448, %v399, 0
        %v474 = vsel %vm448, %v360, 0
        %v477 = vsel %vm448, %v361, 0
        %v480 = vsel %vm448, %v362, 0
        %v483 = vsel %vm448, %v363, 0
        %v486 = vsel %vm448, %v364, 0
        %v489 = vsel %vm448, %v365, 0
        %v492 = vsel %vm448, %v366, 0
        %v495 = vsel %vm448, %v367, 0
        %v498 = vsel %vm448, %v368, 0
        %v501 = vsel %vm448, %v369, 0
        %v504 = vsel %vm448, %v370, 0
        %v507 = vsel %vm448, %v371, 0
        %v510 = vsel %vm448, %v372, 0
        %v513 = vsel %vm448, %v373, 0
        %v516 = vsel %vm448, %v374, 0
        %v519 = vsel %vm448, %v375, 0
        %v522 = vsel %vm448, %v376, 0
        %v525 = vsel %vm448, %v377, 0
        %v528 = vsel %vm448, %v378, 0
        %v531 = vsel %vm448, %v379, 0
        %v534 = vsel %vm448, %v380, 0
        %v537 = vsel %vm448, %v381, 0
        %v540 = vsel %vm448, %v382, 0
        %v543 = vsel %vm448, %v383, 0
        %v546 = vsel %vm448, %v384, 0
        %v549 = vsel %vm448, %v385, 0
        %v552 = vsel %vm448, %v386, 0
        %v555 = vsel %vm448, %v387, 0
        %v558 = vsel %vm448, %v388, 0
        %v561 = vsel %vm448, %v389, 0
        %v564 = vsel %vm448, %v390, 0
        %v567 = vsel %vm448, %v391, 0
        %569 = vmatprep.subr.mxu0 0.0
        %570 = vmatpush1.xpose.msra.mxu0 %v474
        %571 = vmatprep.subr.mxu0 0.0
        %572 = vmatpush1.xpose.msra.mxu0 %v477
        %573 = vmatprep.subr.mxu0 0.0
        %574 = vmatpush1.xpose.msra.mxu0 %v480
        %575 = vmatprep.subr.mxu0 0.0
        %576 = vmatpush1.xpose.msra.mxu0 %v483
        %577 = vmatprep.subr.mxu0 0.0
        %578 = vmatpush1.xpose.msra.mxu0 %v486
        %579 = vmatprep.subr.mxu0 0.0
        %580 = vmatpush1.xpose.msra.mxu0 %v489
        %581 = vmatprep.subr.mxu0 0.0
        %582 = vmatpush1.xpose.msra.mxu0 %v492
        %583 = vmatprep.subr.mxu0 0.0
        %584 = vmatpush1.xpose.msra.mxu0 %v495
        %585 = vmatprep.subr.mxu0 0.0
        %586 = vmatpush1.xpose.msra.mxu0 %v498
        %587 = vmatprep.subr.mxu0 0.0
        %588 = vmatpush1.xpose.msra.mxu0 %v501
        %589 = vmatprep.subr.mxu0 0.0
        %590 = vmatpush1.xpose.msra.mxu0 %v504
        %591 = vmatprep.subr.mxu0 0.0
        %592 = vmatpush1.xpose.msra.mxu0 %v507
        %593 = vmatprep.subr.mxu0 0.0
        %594 = vmatpush1.xpose.msra.mxu0 %v510
        %595 = vmatprep.subr.mxu0 0.0
        %596 = vmatpush1.xpose.msra.mxu0 %v513
        %597 = vmatprep.subr.mxu0 0.0
        %598 = vmatpush1.xpose.msra.mxu0 %v516
        %599 = vmatprep.subr.mxu0 0.0
        %600 = vmatpush1.xpose.msra.mxu0 %v519
        %601 = vmatprep.subr.mxu0 0.0
        %602 = vmatpush1.xpose.msra.mxu0 %v522
        %603 = vmatprep.subr.mxu0 0.0
        %604 = vmatpush1.xpose.msra.mxu0 %v525
        %605 = vmatprep.subr.mxu0 0.0
        %606 = vmatpush1.xpose.msra.mxu0 %v528
        %607 = vmatprep.subr.mxu0 0.0
        %608 = vmatpush1.xpose.msra.mxu0 %v531
        %609 = vmatprep.subr.mxu0 0.0
        %610 = vmatpush1.xpose.msra.mxu0 %v534
        %611 = vmatprep.subr.mxu0 0.0
        %612 = vmatpush1.xpose.msra.mxu0 %v537
        %613 = vmatprep.subr.mxu0 0.0
        %614 = vmatpush1.xpose.msra.mxu0 %v540
        %615 = vmatprep.subr.mxu0 0.0
        %616 = vmatpush1.xpose.msra.mxu0 %v543
        %617 = vmatprep.subr.mxu0 0.0
        %618 = vmatpush1.xpose.msra.mxu0 %v546
        %619 = vmatprep.subr.mxu0 0.0
        %620 = vmatpush1.xpose.msra.mxu0 %v549
        %621 = vmatprep.subr.mxu0 0.0
        %622 = vmatpush1.xpose.msra.mxu0 %v552
        %623 = vmatprep.subr.mxu0 0.0
        %624 = vmatpush1.xpose.msra.mxu0 %v555
        %625 = vmatprep.subr.mxu0 0.0
        %626 = vmatpush1.xpose.msra.mxu0 %v558
        %627 = vmatprep.subr.mxu0 0.0
        %628 = vmatpush1.xpose.msra.mxu0 %v561
        %629 = vmatprep.subr.mxu0 0.0
        %630 = vmatpush1.xpose.msra.mxu0 %v564
        %631 = vmatprep.subr.mxu0 0.0
        %632 = vmatpush1.xpose.msra.mxu0 %v567
        %633 = vmatprep.mubr.f32.mxu0 0.0
        %634 = vmatmul.mubr.f32.gmra.mrb[0].mxu0 %v450
        %v635 = vpop.f32.mrb[0].mxu0
        %v636 = vadd.f32 %v411, %v635
        %v637 = vpop.f32.mrb[0].mxu0
        %v638 = vadd.f32 %v411, %v637
        %639 = vmatprep.mubr.f32.mxu0 0.0
        %640 = vmatmul.mubr.f32.gmra.mrb[0].mxu0 %v453
        %v641 = vpop.f32.mrb[0].mxu0
        %v642 = vadd.f32 %v416, %v641
        %v643 = vpop.f32.mrb[0].mxu0
        %v644 = vadd.f32 %v416, %v643
        %645 = vmatprep.mubr.f32.mxu0 0.0
        %646 = vmatmul.mubr.f32.gmra.mrb[0].mxu0 %v456
        %v647 = vpop.f32.mrb[0].mxu0
        %v648 = vadd.f32 %v421, %v647
        %v649 = vpop.f32.mrb[0].mxu0
        %v650 = vadd.f32 %v421, %v649
        %651 = vmatprep.mubr.f32.mxu0 0.0
        %652 = vmatmul.mubr.f32.gmra.mrb[0].mxu0 %v459
        %v653 = vpop.f32.mrb[0].mxu0
        %v654 = vadd.f32 %v426, %v653
        %v655 = vpop.f32.mrb[0].mxu0
        %v656 = vadd.f32 %v426, %v655
        %657 = vmatprep.mubr.f32.mxu0 0.0
        %658 = vmatmul.mubr.f32.gmra.mrb[0].mxu0 %v462
        %v659 = vpop.f32.mrb[0].mxu0
        %v660 = vadd.f32 %v431, %v659
        %v661 = vpop.f32.mrb[0].mxu0
        %v662 = vadd.f32 %v431, %v661
        %663 = vmatprep.mubr.f32.mxu0 0.0
        %664 = vmatmul.mubr.f32.gmra.mrb[0].mxu0 %v465
        %v665 = vpop.f32.mrb[0].mxu0
        %v666 = vadd.f32 %v436, %v665
        %v667 = vpop.f32.mrb[0].mxu0
        %v668 = vadd.f32 %v436, %v667
        %669 = vmatprep.mubr.f32.mxu0 0.0
        %670 = vmatmul.mubr.f32.gmra.mrb[0].mxu0 %v468
        %v671 = vpop.f32.mrb[0].mxu0
        %v672 = vadd.f32 %v441, %v671
        %v673 = vpop.f32.mrb[0].mxu0
        %v674 = vadd.f32 %v441, %v673
        %675 = vmatprep.mubr.f32.mxu0 0.0
        %676 = vmatmul.mubr.f32.gmra.mrb[0].mxu0 %v471
        %v677 = vpop.f32.mrb[0].mxu0
        %v678 = vadd.f32 %v446, %v677
        %v679 = vpop.f32.mrb[0].mxu0
        %v680 = vadd.f32 %v446, %v679
        %681 = vdwg.mxu0
        %v682 = vmax.f32 %v636, 0.0
        %v683 = vmax.f32 %v638, 0.0
        %v684 = vmax.f32 %v642, 0.0
        %v685 = vmax.f32 %v644, 0.0
        %v686 = vmax.f32 %v648, 0.0
        %v687 = vmax.f32 %v650, 0.0
        %v688 = vmax.f32 %v654, 0.0
        %v689 = vmax.f32 %v656, 0.0
        %v690 = vmax.f32 %v660, 0.0
        %v691 = vmax.f32 %v662, 0.0
        %v692 = vmax.f32 %v666, 0.0
        %v693 = vmax.f32 %v668, 0.0
        %v694 = vmax.f32 %v672, 0.0
        %v695 = vmax.f32 %v674, 0.0
        %v696 = vmax.f32 %v678, 0.0
        %v697 = vmax.f32 %v680, 0.0
        %v698 = vld [vmem:[%s3] sm:$0xff]
        %v699 = vld [vmem:[%s3 + $0x8] sm:$0xff]
        %v700 = vld [vmem:[%s3 + $0x10] sm:$0xff]
        %v701 = vld [vmem:[%s3 + $0x18] sm:$0xff]
        %v702 = vld [vmem:[%s4] sm:$0xff]
        %v703 = vld [vmem:[%s4 + $0x8] sm:$0xff]
        %v704 = vld [vmem:[%s4 + $0x10] sm:$0xff]
        %v705 = vld [vmem:[%s4 + $0x18] sm:$0xff]
        %707 = vset.pattern.permute.xlu0 0
        %708 = vperm.xlu0 %707, %v702
        %v709 = vpop.permute.xlu0 %708
        %712 = vset.pattern.permute.xlu0 0
        %713 = vperm.xlu0 %712, %v703
        %v714 = vpop.permute.xlu0 %713
        %717 = vset.pattern.permute.xlu0 0
        %718 = vperm.xlu0 %717, %v704
        %v719 = vpop.permute.xlu0 %718
        %722 = vset.pattern.permute.xlu0 0
        %723 = vperm.xlu0 %722, %v705
        %v724 = vpop.permute.xlu0 %723
        %vm726 = vcmask 523264
        %v728 = vsel %vm726, %v698, 0
        %v731 = vsel %vm726, %v699, 0
        %v734 = vsel %vm726, %v700, 0
        %v737 = vsel %vm726, %v701, 0
        %739 = vmatprep.subr.mxu0 %v683
        %740 = vmatpush1.msra.mxu0 %v682
        %741 = vmatprep.subr.mxu0 %v685
        %742 = vmatpush1.msra.mxu0 %v684
        %743 = vmatprep.subr.mxu0 %v687
        %744 = vmatpush1.msra.mxu0 %v686
        %745 = vmatprep.subr.mxu0 %v689
        %746 = vmatpush1.msra.mxu0 %v688
        %747 = vmatprep.subr.mxu0 %v691
        %748 = vmatpush1.msra.mxu0 %v690
        %749 = vmatprep.subr.mxu0 %v693
        %750 = vmatpush1.msra.mxu0 %v692
        %751 = vmatprep.subr.mxu0 %v695
        %752 = vmatpush1.msra.mxu0 %v694
        %753 = vmatprep.subr.mxu0 %v697
        %754 = vmatpush1.msra.mxu0 %v696
        %755 = vmatprep.subr.mxu0 0.0
        %756 = vmatpush1.msra.mxu0 0.0
        %757 = vmatprep.subr.mxu0 0.0
        %758 = vmatpush1.msra.mxu0 0.0
        %759 = vmatprep.subr.mxu0 0.0
        %760 = vmatpush1.msra.mxu0 0.0
        %761 = vmatprep.subr.mxu0 0.0
        %762 = vmatpush1.msra.mxu0 0.0
        %763 = vmatprep.subr.mxu0 0.0
        %764 = vmatpush1.msra.mxu0 0.0
        %765 = vmatprep.subr.mxu0 0.0
        %766 = vmatpush1.msra.mxu0 0.0
        %767 = vmatprep.subr.mxu0 0.0
        %768 = vmatpush1.msra.mxu0 0.0
        %769 = vmatprep.subr.mxu0 0.0
        %770 = vmatpush1.msra.mxu0 0.0
        %771 = vmatprep.subr.mxu0 0.0
        %772 = vmatpush1.msra.mxu0 0.0
        %773 = vmatprep.subr.mxu0 0.0
        %774 = vmatpush1.msra.mxu0 0.0
        %775 = vmatprep.subr.mxu0 0.0
        %776 = vmatpush1.msra.mxu0 0.0
        %777 = vmatprep.subr.mxu0 0.0
        %778 = vmatpush1.msra.mxu0 0.0
        %779 = vmatprep.subr.mxu0 0.0
        %780 = vmatpush1.msra.mxu0 0.0
        %781 = vmatprep.subr.mxu0 0.0
        %782 = vmatpush1.msra.mxu0 0.0
        %783 = vmatprep.subr.mxu0 0.0
        %784 = vmatpush1.msra.mxu0 0.0
        %785 = vmatprep.subr.mxu0 0.0
        %786 = vmatpush1.msra.mxu0 0.0
        %787 = vmatprep.subr.mxu0 0.0
        %788 = vmatpush1.msra.mxu0 0.0
        %789 = vmatprep.subr.mxu0 0.0
        %790 = vmatpush1.msra.mxu0 0.0
        %791 = vmatprep.subr.mxu0 0.0
        %792 = vmatpush1.msra.mxu0 0.0
        %793 = vmatprep.subr.mxu0 0.0
        %794 = vmatpush1.msra.mxu0 0.0
        %795 = vmatprep.subr.mxu0 0.0
        %796 = vmatpush1.msra.mxu0 0.0
        %797 = vmatprep.subr.mxu0 0.0
        %798 = vmatpush1.msra.mxu0 0.0
        %799 = vmatprep.subr.mxu0 0.0
        %800 = vmatpush1.msra.mxu0 0.0
        %801 = vmatprep.subr.mxu0 0.0
        %802 = vmatpush1.msra.mxu0 0.0
        %803 = vmatprep.mubr.f32.mxu0 0.0
        %804 = vmatmul.mubr.f32.gmra.mrb[0].mxu0 %v728
        %v805 = vpop.f32.mrb[0].mxu0
        %v806 = vadd.f32 %v709, %v805
        %v807 = vpop.f32.mrb[0].mxu0
        %v808 = vadd.f32 %v709, %v807
        %809 = vmatprep.mubr.f32.mxu0 0.0
        %810 = vmatmul.mubr.f32.gmra.mrb[0].mxu0 %v731
        %v811 = vpop.f32.mrb[0].mxu0
        %v812 = vadd.f32 %v714, %v811
        %v813 = vpop.f32.mrb[0].mxu0
        %v814 = vadd.f32 %v714, %v813
        %815 = vmatprep.mubr.f32.mxu0 0.0
        %816 = vmatmul.mubr.f32.gmra.mrb[0].mxu0 %v734
        %v817 = vpop.f32.mrb[0].mxu0
        %v818 = vadd.f32 %v719, %v817
        %v819 = vpop.f32.mrb[0].mxu0
        %v820 = vadd.f32 %v719, %v819
        %821 = vmatprep.mubr.f32.mxu0 0.0
        %822 = vmatmul.mubr.f32.gmra.mrb[0].mxu0 %v737
        %v823 = vpop.f32.mrb[0].mxu0
        %v824 = vadd.f32 %v724, %v823
        %v825 = vpop.f32.mrb[0].mxu0
        %v826 = vadd.f32 %v724, %v825
        %827 = vdwg.mxu0
        %v828 = vmax.f32 %v806, 0.0
        %v829 = vmax.f32 %v808, 0.0
        %v830 = vmax.f32 %v812, 0.0
        %v831 = vmax.f32 %v814, 0.0
        %v832 = vmax.f32 %v818, 0.0
        %v833 = vmax.f32 %v820, 0.0
        %v834 = vmax.f32 %v824, 0.0
        %v835 = vmax.f32 %v826, 0.0
        %v836 = vld [vmem:[%s5] sm:$0xff]
        %v837 = vld [vmem:[%s5 + $0x8] sm:$0xff]
        %v838 = vld [vmem:[%s6] sm:$0xff]
        %v839 = vld [vmem:[%s6 + $0x8] sm:$0xff]
        %841 = vset.pattern.permute.xlu0 0
        %842 = vperm.xlu0 %841, %v838
        %v843 = vpop.permute.xlu0 %842
        %846 = vset.pattern.permute.xlu0 0
        %847 = vperm.xlu0 %846, %v839
        %v848 = vpop.permute.xlu0 %847
        %vm850 = vcmask 261120
        %v852 = vsel %vm850, %v836, 0
        %v855 = vsel %vm850, %v837, 0
        %857 = vmatprep.subr.mxu0 %v829
        %858 = vmatpush1.msra.mxu0 %v828
        %859 = vmatprep.subr.mxu0 %v831
        %860 = vmatpush1.msra.mxu0 %v830
        %861 = vmatprep.subr.mxu0 %v833
        %862 = vmatpush1.msra.mxu0 %v832
        %863 = vmatprep.subr.mxu0 %v835
        %864 = vmatpush1.msra.mxu0 %v834
        %865 = vmatprep.subr.mxu0 0.0
        %866 = vmatpush1.msra.mxu0 0.0
        %867 = vmatprep.subr.mxu0 0.0
        %868 = vmatpush1.msra.mxu0 0.0
        %869 = vmatprep.subr.mxu0 0.0
        %870 = vmatpush1.msra.mxu0 0.0
        %871 = vmatprep.subr.mxu0 0.0
        %872 = vmatpush1.msra.mxu0 0.0
        %873 = vmatprep.subr.mxu0 0.0
        %874 = vmatpush1.msra.mxu0 0.0
        %875 = vmatprep.subr.mxu0 0.0
        %876 = vmatpush1.msra.mxu0 0.0
        %877 = vmatprep.subr.mxu0 0.0
        %878 = vmatpush1.msra.mxu0 0.0
        %879 = vmatprep.subr.mxu0 0.0
        %880 = vmatpush1.msra.mxu0 0.0
        %881 = vmatprep.subr.mxu0 0.0
        %882 = vmatpush1.msra.mxu0 0.0
        %883 = vmatprep.subr.mxu0 0.0
        %884 = vmatpush1.msra.mxu0 0.0
        %885 = vmatprep.subr.mxu0 0.0
        %886 = vmatpush1.msra.mxu0 0.0
        %887 = vmatprep.subr.mxu0 0.0
        %888 = vmatpush1.msra.mxu0 0.0
        %889 = vmatprep.subr.mxu0 0.0
        %890 = vmatpush1.msra.mxu0 0.0
        %891 = vmatprep.subr.mxu0 0.0
        %892 = vmatpush1.msra.mxu0 0.0
        %893 = vmatprep.subr.mxu0 0.0
        %894 = vmatpush1.msra.mxu0 0.0
        %895 = vmatprep.subr.mxu0 0.0
        %896 = vmatpush1.msra.mxu0 0.0
        %897 = vmatprep.subr.mxu0 0.0
        %898 = vmatpush1.msra.mxu0 0.0
        %899 = vmatprep.subr.mxu0 0.0
        %900 = vmatpush1.msra.mxu0 0.0
        %901 = vmatprep.subr.mxu0 0.0
        %902 = vmatpush1.msra.mxu0 0.0
        %903 = vmatprep.subr.mxu0 0.0
        %904 = vmatpush1.msra.mxu0 0.0
        %905 = vmatprep.subr.mxu0 0.0
        %906 = vmatpush1.msra.mxu0 0.0
        %907 = vmatprep.subr.mxu0 0.0
        %908 = vmatpush1.msra.mxu0 0.0
        %909 = vmatprep.subr.mxu0 0.0
        %910 = vmatpush1.msra.mxu0 0.0
        %911 = vmatprep.subr.mxu0 0.0
        %912 = vmatpush1.msra.mxu0 0.0
        %913 = vmatprep.subr.mxu0 0.0
        %914 = vmatpush1.msra.mxu0 0.0
        %915 = vmatprep.subr.mxu0 0.0
        %916 = vmatpush1.msra.mxu0 0.0
        %917 = vmatprep.subr.mxu0 0.0
        %918 = vmatpush1.msra.mxu0 0.0
        %919 = vmatprep.subr.mxu0 0.0
        %920 = vmatpush1.msra.mxu0 0.0
        %921 = vmatprep.mubr.f32.mxu0 0.0
        %922 = vmatmul.mubr.f32.gmra.mrb[0].mxu0 %v852
        %v923 = vpop.f32.mrb[0].mxu0
        %v924 = vadd.f32 %v843, %v923
        %v925 = vpop.f32.mrb[0].mxu0
        %v926 = vadd.f32 %v843, %v925
        %927 = vmatprep.mubr.f32.mxu0 0.0
        %928 = vmatmul.mubr.f32.gmra.mrb[0].mxu0 %v855
        %v929 = vpop.f32.mrb[0].mxu0
        %v930 = vadd.f32 %v848, %v929
        %v931 = vpop.f32.mrb[0].mxu0
        %v932 = vadd.f32 %v848, %v931
        %933 = vdwg.mxu0
        %v934 = vmax.f32 %v924, 0.0
        %v935 = vmax.f32 %v926, 0.0
        %v936 = vmax.f32 %v930, 0.0
        %v937 = vmax.f32 %v932, 0.0
        %v938 = vld [vmem:[%s7] sm:$0x1]
        %v939 = vld [vmem:[#allocation2] sm:$0x1]
        %941 = vset.pattern.permute.xlu0 0
        %942 = vperm.xlu0 %941, %v939
        %v943 = vpop.permute.xlu0 %942
        %v945 = vlaneseq
        %v946 = vshrl.u32 %v945, 7
        %v947 = vsub.s32 0, %v946
        %v948 = vrot.slane %v943, %v947
        %vm949 = vcmask 130048
        %v951 = vsel %vm949, %v938, 0
        %953 = vmatprep.subr.mxu0 %v935
        %954 = vmatpush1.msra.mxu0 %v934
        %955 = vmatprep.subr.mxu0 %v937
        %956 = vmatpush1.msra.mxu0 %v936
        %957 = vmatprep.subr.mxu0 0.0
        %958 = vmatpush1.msra.mxu0 0.0
        %959 = vmatprep.subr.mxu0 0.0
        %960 = vmatpush1.msra.mxu0 0.0
        %961 = vmatprep.subr.mxu0 0.0
        %962 = vmatpush1.msra.mxu0 0.0
        %963 = vmatprep.subr.mxu0 0.0
        %964 = vmatpush1.msra.mxu0 0.0
        %965 = vmatprep.subr.mxu0 0.0
        %966 = vmatpush1.msra.mxu0 0.0
        %967 = vmatprep.subr.mxu0 0.0
        %968 = vmatpush1.msra.mxu0 0.0
        %969 = vmatprep.subr.mxu0 0.0
        %970 = vmatpush1.msra.mxu0 0.0
        %971 = vmatprep.subr.mxu0 0.0
        %972 = vmatpush1.msra.mxu0 0.0
        %973 = vmatprep.subr.mxu0 0.0
        %974 = vmatpush1.msra.mxu0 0.0
        %975 = vmatprep.subr.mxu0 0.0
        %976 = vmatpush1.msra.mxu0 0.0
        %977 = vmatprep.subr.mxu0 0.0
        %978 = vmatpush1.msra.mxu0 0.0
        %979 = vmatprep.subr.mxu0 0.0
        %980 = vmatpush1.msra.mxu0 0.0
        %981 = vmatprep.subr.mxu0 0.0
        %982 = vmatpush1.msra.mxu0 0.0
        %983 = vmatprep.subr.mxu0 0.0
        %984 = vmatpush1.msra.mxu0 0.0
        %985 = vmatprep.subr.mxu0 0.0
        %986 = vmatpush1.msra.mxu0 0.0
        %987 = vmatprep.subr.mxu0 0.0
        %988 = vmatpush1.msra.mxu0 0.0
        %989 = vmatprep.subr.mxu0 0.0
        %990 = vmatpush1.msra.mxu0 0.0
        %991 = vmatprep.subr.mxu0 0.0
        %992 = vmatpush1.msra.mxu0 0.0
        %993 = vmatprep.subr.mxu0 0.0
        %994 = vmatpush1.msra.mxu0 0.0
        %995 = vmatprep.subr.mxu0 0.0
        %996 = vmatpush1.msra.mxu0 0.0
        %997 = vmatprep.subr.mxu0 0.0
        %998 = vmatpush1.msra.mxu0 0.0
        %999 = vmatprep.subr.mxu0 0.0
        %1000 = vmatpush1.msra.mxu0 0.0
        %1001 = vmatprep.subr.mxu0 0.0
        %1002 = vmatpush1.msra.mxu0 0.0
        %1003 = vmatprep.subr.mxu0 0.0
        %1004 = vmatpush1.msra.mxu0 0.0
        %1005 = vmatprep.subr.mxu0 0.0
        %1006 = vmatpush1.msra.mxu0 0.0
        %1007 = vmatprep.subr.mxu0 0.0
        %1008 = vmatpush1.msra.mxu0 0.0
        %1009 = vmatprep.subr.mxu0 0.0
        %1010 = vmatpush1.msra.mxu0 0.0
        %1011 = vmatprep.subr.mxu0 0.0
        %1012 = vmatpush1.msra.mxu0 0.0
        %1013 = vmatprep.subr.mxu0 0.0
        %1014 = vmatpush1.msra.mxu0 0.0
        %1015 = vmatprep.subr.mxu0 0.0
        %1016 = vmatpush1.msra.mxu0 0.0
        %1017 = vmatprep.mubr.f32.mxu0 0.0
        %1018 = vmatmul.mubr.f32.gmra.mrb[0].mxu0 %v951
        %v1019 = vpop.f32.mrb[0].mxu0
        %v1020 = vadd.f32 %v948, %v1019
        %v1021 = vpop.f32.mrb[0].mxu0
        %v1022 = vadd.f32 %v948, %v1021
        %1023 = vdwg.mxu0
        %v1026 = vcombine.low %v1020, %v1022
        %v1028 = vunpack.c.l.s4 1966171168
        %v1029 = vunpack.c.0.s8 %v1028
        %v1030 = vlaneseq
        %v1031 = vshrl.u32 %v1030, 7
        %v1032 = vsub.s32 %v1029, %v1031
        %v1033 = vrot.slane %v1026, %v1032
        %v1035 = vunpack.c.l.s4 1966171168
        %v1036 = vunpack.c.0.s8 %v1035
        %v1037 = vlaneseq
        %v1038 = vshrl.u32 %v1037, 7
        %v1039 = vsub.s32 %v1036, %v1038
        %v1040 = vrot.slane %v1033, %v1039
        %v1042 = vlaneseq
        %vm1043 = vcmp.ge.s32.totalorder %v1042, 0
        %vm1044 = vcmp.lt.s32.totalorder %v1042, 256
        %vm1045 = vmand %vm1043, %vm1044
        %1046 = vst.msk [vmem:[%s340] sm:$0x3] %vm1045, %v1040
        %s1047 = sand.u32 %s227, 1
        %s1048 = scalar_lea.sflag [#allocation4], %s1047
        %s1049 = sand.u32 %s227, 1
        %s1050 = smul.addr %s1049, 2
        %s1051 = scalar_lea.vmem [#allocation3], %s1050
        // Predicated region
        $region57: #{tpu_custom_call.1} parent=55 // pred_check
          %p1052 = pneg %p237
        $region58: #{tpu_custom_call.1} parent=55 // pred_check_branch
          %1054 = sbr.rel (%p1052) target = $region60
        $region59: #{tpu_custom_call.1} parent=55 // pred_region
          %s1055 = smul.u32 2, %s25
          %s1056 = ssub.s32 3, %s1055
          %p1057 = scmp.lt.s32.totalorder %s1056, 2
          %s1058 = scalar_select %p1057, %s1056, 2
          %s1059 = smul.u32 16, %s1058
          %s1061 = ssub.s32 32, %s1059
          %1062 = vsyncadd %s1048, %s1061
          %p1063 = scmp.ne.s32.totalorder 0, %s1059
          %s1064 = smul.addr %s1055, 16
          %s1065 = scalar_lea.hbm %s9, %s1064
          %s1066 = sshll.u32 %s1058, 4
          %s1067 = sshll.u32 %s1051, 4
          %s1068 = int_to_ptr.vmem [resolvable:$true] %s1067
          %1070 = dma.vmem_to_hbm [thread:$0]  (%p1063), %s1068, %s1066, %s1065, %s1048
        $region60: #{tpu_custom_call.1} parent=55 // pred_fallthru
          _
      $region56: #{tpu_custom_call.1} parent=5 // pred_fallthru
        _
      %p1071 = scmp.le.s32.totalorder 2, %s20
      // Predicated region
      $region61: #{tpu_custom_call.1} parent=5 // pred_check
        %p1072 = pneg %p1071
      $region62: #{tpu_custom_call.1} parent=5 // pred_check_branch
        %1074 = sbr.rel (%p1072) target = $region64
      $region63: #{tpu_custom_call.1} parent=5 // pred_region
        %s1075 = ssub.s32 %s20, 2
        // Predicated region
        $region65: #{tpu_custom_call.1} parent=63 // pred_check
          %p1076 = pneg %p243
        $region66: #{tpu_custom_call.1} parent=63 // pred_check_branch
          %1078 = sbr.rel (%p1076) target = $region68
        $region67: #{tpu_custom_call.1} parent=63 // pred_region
          %s1079 = sand.u32 %s228, 1
          %s1080 = scalar_lea.sflag [#allocation4], %s1079
          %s1081 = sand.u32 %s228, 1
          %s1082 = smul.addr %s1081, 2
          %s1083 = scalar_lea.vmem [#allocation3], %s1082
          %1084 = dma.done %s1080, 32
        $region68: #{tpu_custom_call.1} parent=63 // pred_fallthru
          _
      $region64: #{tpu_custom_call.1} parent=5 // pred_fallthru
        _
    $region6: #{tpu_custom_call.1} parent=1 // loop_footer
      %s24 = sadd.s32 1, %s20
    $region7: #{tpu_custom_call.1} parent=1 // loop_footer_branch
      %19 = sbr.rel target = $region3
    $region8: #{tpu_custom_call.1} parent=1 // loop_exit
      _
    %1085 = vsyncpa [#allocation4], 1
    %s1086 = scalar_lea.sflag [#allocation4], 1
    %1087 = vsyncpa %s1086, 1

</llo_original>
